<compile_context>
chip_gen: v6e
topology: v6e:2x2x1
jax: 0.10.0
libtpu: 0.0.40
codegen_flags: <defaults>
</compile_context>

<pallas_src>
import math

import jax
import jax.numpy as jnp
from jax import lax
from jax.experimental import pallas as pl
from jax.experimental.pallas import tpu as pltpu


def _round_up(n, m):
    return ((n + m - 1) // m) * m


def mlp_kernel(x_ref, w1_ref, b1_ref, w2_ref, b2_ref, w3_ref, b3_ref, o_ref):
    # x tile: (bt, cin) f32, batch on the sublane axis.  Weights are
    # PyTorch-native (out, in); contract the last dims (== x @ W.T).
    dn = (((1,), (1,)), ((), ()))

    x = x_ref[...]                                                     # (bt, cin)

    h1 = lax.dot_general(x, w1_ref[...], dn,
                         preferred_element_type=jnp.float32)           # (bt, h1)
    h1 = jnp.maximum(h1 + b1_ref[...], 0.0)

    h2 = lax.dot_general(h1, w2_ref[...], dn,
                         preferred_element_type=jnp.float32)           # (bt, h2)
    h2 = jnp.maximum(h2 + b2_ref[...], 0.0)

    out = lax.dot_general(h2, w3_ref[...], dn,
                          preferred_element_type=jnp.float32)          # (bt, cout)
    o_ref[...] = (out + b3_ref[...]).astype(o_ref.dtype)


def bunny_regressor_forward(x, params, *, batch_tile=2048):
    """x: (B, in_channels) float32.

    params: w1 (h1, cin), b1 (1, h1), w2 (h2, h1), b2 (1, h2),
            w3 (cout, h2), b3 (1, cout)   -- PyTorch-native (out, in) weights.
    Returns (B, cout) float32.
    """
    w1, b1 = params["w1"], params["b1"]
    w2, b2 = params["w2"], params["b2"]
    w3, b3 = params["w3"], params["b3"]

    B, cin = x.shape
    h1 = w1.shape[0]
    h2 = w2.shape[0]
    cout = w3.shape[0]

    # --- batch tiling ------------------------------------------------------
    # Small batches: a single full-array block (no (8,128) constraint since
    # block dims == array dims).  Larger batches: a capped, 128-aligned tile
    # chosen so the grid has >= 2 steps (both TensorCores on v7x), padding B
    # up to a multiple of the tile when needed (padded rows are sliced off).
    if B <= 128:
        bt, Bp = B, B
    else:
        bt = min(batch_tile, _round_up(pl.cdiv(B, 2), 128))
        Bp = _round_up(B, bt)

    x_in = x if Bp == B else jnp.pad(x, ((0, Bp - B), (0, 0)))
    grid = (Bp // bt,)

    in_specs = [
        pl.BlockSpec((bt, cin), lambda i: (i, 0)),     # x: only batch is tiled
        pl.BlockSpec((h1, cin), lambda i: (0, 0)),     # w1 (grid-invariant)
        pl.BlockSpec((1, h1), lambda i: (0, 0)),       # b1
        pl.BlockSpec((h2, h1), lambda i: (0, 0)),      # w2
        pl.BlockSpec((1, h2), lambda i: (0, 0)),       # b2
        pl.BlockSpec((cout, h2), lambda i: (0, 0)),    # w3
        pl.BlockSpec((1, cout), lambda i: (0, 0)),     # b3
    ]
    out_specs = pl.BlockSpec((bt, cout), lambda i: (i, 0))

    flops = 2 * Bp * (cin * h1 + h1 * h2 + h2 * cout)
    param_bytes = 4 * (h1 * cin + h1 + h2 * h1 + h2 + cout * h2 + cout)
    bytes_accessed = 4 * Bp * (cin + cout) + param_bytes

    out = pl.pallas_call(
        mlp_kernel,
        out_shape=jax.ShapeDtypeStruct((Bp, cout), jnp.float32),
        grid=grid,
        in_specs=in_specs,
        out_specs=out_specs,
        compiler_params=pltpu.CompilerParams(
            # Batch steps are independent -> sharded across v7x's 2 TCs;
            # harmless no-op on v5e/v6e.
            dimension_semantics=("parallel",),
        ),
        cost_estimate=pl.CostEstimate(
            flops=flops, transcendentals=0, bytes_accessed=bytes_accessed),
    )(x_in, w1, b1, w2, b2, w3, b3)

    return out if Bp == B else out[:B]


def init_params(key, in_channels, first_hidden, second_hidden, out_channels):
    """nn.Linear-style init (U[-1/sqrt(fan_in), 1/sqrt(fan_in)]), PyTorch (out, in) layout."""
    keys = jax.random.split(key, 6)

    def linear(kw, kb, fan_in, fan_out):
        bound = 1.0 / math.sqrt(fan_in)
        w = jax.random.uniform(kw, (fan_out, fan_in), jnp.float32, -bound, bound)
        b = jax.random.uniform(kb, (1, fan_out), jnp.float32, -bound, bound)
        return w, b

    w1, b1 = linear(keys[0], keys[1], in_channels, first_hidden)
    w2, b2 = linear(keys[2], keys[3], first_hidden, second_hidden)
    w3, b3 = linear(keys[4], keys[5], second_hidden, out_channels)
    return {"w1": w1, "b1": b1, "w2": w2, "b2": b2, "w3": w3, "b3": b3}


def reference_forward(x, params):
    """Pure-JAX f32 reference (HIGHEST precision = true f32 matmuls)."""
    hp = lax.Precision.HIGHEST
    h1 = jnp.maximum(jnp.dot(x, params["w1"].T, precision=hp) + params["b1"], 0.0)
    h2 = jnp.maximum(jnp.dot(h1, params["w2"].T, precision=hp) + params["b2"], 0.0)
    return jnp.dot(h2, params["w3"].T, precision=hp) + params["b3"]


if __name__ == "__main__":
    in_channels = 8
    first_hidden = 32
    second_hidden = 32
    out_channels = 4

    key = jax.random.PRNGKey(0)
    kp, kx1, kx2 = jax.random.split(key, 3)
    params = init_params(kp, in_channels, first_hidden, second_hidden, out_channels)

    # Tolerance note: the kernel's f32 matmuls run on the MXU; depending on the
    # generation/compiler they may use bf16 passes, so we compare against a
    # true-f32 (HIGHEST precision) reference with a bf16-pass-sized tolerance.
    ATOL = RTOL = 2e-2

    # Path 1: small batch -> single grid step (block == full array dims).
    batch1 = 16
    x1 = jax.random.normal(kx1, (batch1, in_channels), jnp.float32)
    out1 = jax.block_until_ready(bunny_regressor_forward(x1, params))
    ref1 = reference_forward(x1, params)
    assert out1.shape == (batch1, out_channels)
    assert jnp.allclose(out1, ref1, atol=ATOL, rtol=RTOL), "small-batch mismatch vs reference"

    # Path 2: non-divisible batch -> padded to 256, two 128-row lane-aligned
    # tiles (2 grid steps; exercises padding + multi-TC path on v7x).
    batch2 = 200
    x2 = jax.random.normal(kx2, (batch2, in_channels), jnp.float32)
    out2 = jax.block_until_ready(bunny_regressor_forward(x2, params))
    ref2 = reference_forward(x2, params)
    assert out2.shape == (batch2, out_channels)
    assert jnp.allclose(out2, ref2, atol=ATOL, rtol=RTOL), "tiled-batch mismatch vs reference"

    print("KERNEL_OK")
</pallas_src>

<mosaic_0001>
module attributes {stable_mosaic.version = 11 : i64} {
  func.func @mlp_kernel(%arg0: i32, %arg1: memref<16x8xf32, #tpu.memory_space<vmem>>, %arg2: memref<32x8xf32, #tpu.memory_space<vmem>>, %arg3: memref<1x32xf32, #tpu.memory_space<vmem>>, %arg4: memref<32x32xf32, #tpu.memory_space<vmem>>, %arg5: memref<1x32xf32, #tpu.memory_space<vmem>>, %arg6: memref<4x32xf32, #tpu.memory_space<vmem>>, %arg7: memref<1x4xf32, #tpu.memory_space<vmem>>, %arg8: memref<16x4xf32, #tpu.memory_space<vmem>>) attributes {dimension_semantics = [#tpu.dimension_semantics<parallel>], iteration_bounds = array<i64: 1>, scalar_prefetch = 0 : i64, scratch_operands = 0 : i64, tpu.core_type = #tpu.core_type<tc>, window_params = [{transform_indices = @transform_0, window_bounds = array<i64: 16, 8>}, {pipeline_mode = #tpu.pipeline_mode<synchronous>, transform_indices = @transform_1, window_bounds = array<i64: 32, 8>}, {pipeline_mode = #tpu.pipeline_mode<synchronous>, transform_indices = @transform_2, window_bounds = array<i64: 1, 32>}, {pipeline_mode = #tpu.pipeline_mode<synchronous>, transform_indices = @transform_3, window_bounds = array<i64: 32, 32>}, {pipeline_mode = #tpu.pipeline_mode<synchronous>, transform_indices = @transform_4, window_bounds = array<i64: 1, 32>}, {pipeline_mode = #tpu.pipeline_mode<synchronous>, transform_indices = @transform_5, window_bounds = array<i64: 4, 32>}, {pipeline_mode = #tpu.pipeline_mode<synchronous>, transform_indices = @transform_6, window_bounds = array<i64: 1, 4>}, {transform_indices = @transform_7, window_bounds = array<i64: 16, 4>}]} {
    %c0 = arith.constant 0 : index
    %c0_0 = arith.constant 0 : index
    %0 = vector.load %arg1[%c0, %c0_0] : memref<16x8xf32, #tpu.memory_space<vmem>>, vector<16x8xf32>
    %c0_1 = arith.constant 0 : index
    %c0_2 = arith.constant 0 : index
    %1 = vector.load %arg2[%c0_1, %c0_2] : memref<32x8xf32, #tpu.memory_space<vmem>>, vector<32x8xf32>
    %cst = arith.constant dense<0.000000e+00> : vector<16x32xf32>
    %2 = tpu.matmul %0, %1, %cst {dimension_numbers = #tpu.dot_dimension_numbers<[1], [1], [0], [0], [0, 0, 1, 0], [], []>} : vector<16x8xf32>, vector<32x8xf32>, vector<16x32xf32> -> vector<16x32xf32>
    %c0_3 = arith.constant 0 : index
    %c0_4 = arith.constant 0 : index
    %3 = vector.load %arg3[%c0_3, %c0_4] : memref<1x32xf32, #tpu.memory_space<vmem>>, vector<1x32xf32>
    %4 = vector.broadcast %3 : vector<1x32xf32> to vector<16x32xf32>
    %5 = arith.addf %2, %4 : vector<16x32xf32>
    %cst_5 = arith.constant 0.000000e+00 : f32
    %6 = vector.broadcast %cst_5 : f32 to vector<16x32xf32>
    %7 = arith.maximumf %5, %6 : vector<16x32xf32>
    %c0_6 = arith.constant 0 : index
    %c0_7 = arith.constant 0 : index
    %8 = vector.load %arg4[%c0_6, %c0_7] : memref<32x32xf32, #tpu.memory_space<vmem>>, vector<32x32xf32>
    %cst_8 = arith.constant dense<0.000000e+00> : vector<16x32xf32>
    %9 = tpu.matmul %7, %8, %cst_8 {dimension_numbers = #tpu.dot_dimension_numbers<[1], [1], [0], [0], [0, 0, 1, 0], [], []>} : vector<16x32xf32>, vector<32x32xf32>, vector<16x32xf32> -> vector<16x32xf32>
    %c0_9 = arith.constant 0 : index
    %c0_10 = arith.constant 0 : index
    %10 = vector.load %arg5[%c0_9, %c0_10] : memref<1x32xf32, #tpu.memory_space<vmem>>, vector<1x32xf32>
    %11 = vector.broadcast %10 : vector<1x32xf32> to vector<16x32xf32>
    %12 = arith.addf %9, %11 : vector<16x32xf32>
    %cst_11 = arith.constant 0.000000e+00 : f32
    %13 = vector.broadcast %cst_11 : f32 to vector<16x32xf32>
    %14 = arith.maximumf %12, %13 : vector<16x32xf32>
    %c0_12 = arith.constant 0 : index
    %c0_13 = arith.constant 0 : index
    %15 = vector.load %arg6[%c0_12, %c0_13] : memref<4x32xf32, #tpu.memory_space<vmem>>, vector<4x32xf32>
    %cst_14 = arith.constant dense<0.000000e+00> : vector<16x4xf32>
    %16 = tpu.matmul %14, %15, %cst_14 {dimension_numbers = #tpu.dot_dimension_numbers<[1], [1], [0], [0], [0, 0, 1, 0], [], []>} : vector<16x32xf32>, vector<4x32xf32>, vector<16x4xf32> -> vector<16x4xf32>
    %c0_15 = arith.constant 0 : index
    %c0_16 = arith.constant 0 : index
    %17 = vector.load %arg7[%c0_15, %c0_16] : memref<1x4xf32, #tpu.memory_space<vmem>>, vector<1x4xf32>
    %18 = vector.broadcast %17 : vector<1x4xf32> to vector<16x4xf32>
    %19 = arith.addf %16, %18 : vector<16x4xf32>
    %c0_17 = arith.constant 0 : index
    %c0_18 = arith.constant 0 : index
    %20 = vector.load %arg8[%c0_17, %c0_18] : memref<16x4xf32, #tpu.memory_space<vmem>>, vector<16x4xf32>
    tpu.vector_store %arg8[%c0_17, %c0_18], %19 {strides = array<i32>} : memref<16x4xf32, #tpu.memory_space<vmem>>, vector<16x4xf32>,
    return
  }
  func.func @transform_0(%arg0: i32) -> (i32, i32) {
    %c0_i32 = arith.constant 0 : i32
    %c0_i32_0 = arith.constant 0 : i32
    return %arg0, %c0_i32 : i32, i32
  }
  func.func @transform_1(%arg0: i32) -> (i32, i32) {
    %c0_i32 = arith.constant 0 : i32
    %c0_i32_0 = arith.constant 0 : i32
    %c0_i32_1 = arith.constant 0 : i32
    return %c0_i32, %c0_i32_0 : i32, i32
  }
  func.func @transform_2(%arg0: i32) -> (i32, i32) {
    %c0_i32 = arith.constant 0 : i32
    %c0_i32_0 = arith.constant 0 : i32
    %c0_i32_1 = arith.constant 0 : i32
    return %c0_i32, %c0_i32_0 : i32, i32
  }
  func.func @transform_3(%arg0: i32) -> (i32, i32) {
    %c0_i32 = arith.constant 0 : i32
    %c0_i32_0 = arith.constant 0 : i32
    %c0_i32_1 = arith.constant 0 : i32
    return %c0_i32, %c0_i32_0 : i32, i32
  }
  func.func @transform_4(%arg0: i32) -> (i32, i32) {
    %c0_i32 = arith.constant 0 : i32
    %c0_i32_0 = arith.constant 0 : i32
    %c0_i32_1 = arith.constant 0 : i32
    return %c0_i32, %c0_i32_0 : i32, i32
  }
  func.func @transform_5(%arg0: i32) -> (i32, i32) {
    %c0_i32 = arith.constant 0 : i32
    %c0_i32_0 = arith.constant 0 : i32
    %c0_i32_1 = arith.constant 0 : i32
    return %c0_i32, %c0_i32_0 : i32, i32
  }
  func.func @transform_6(%arg0: i32) -> (i32, i32) {
    %c0_i32 = arith.constant 0 : i32
    %c0_i32_0 = arith.constant 0 : i32
    %c0_i32_1 = arith.constant 0 : i32
    return %c0_i32, %c0_i32_0 : i32, i32
  }
  func.func @transform_7(%arg0: i32) -> (i32, i32) {
    %c0_i32 = arith.constant 0 : i32
    %c0_i32_0 = arith.constant 0 : i32
    return %arg0, %c0_i32 : i32, i32
  }
}

</mosaic_0001>

<llo_original>
// kernel: tpu_custom_call.1
$region0: #{tpu_custom_call.1}
  #allocation0 [shape = 'u32[]', space=smem, size = 0x4, offset = 0x4, fixed_abs, tag = 'smem constant byte address 0x4 - core index']
  #allocation1 [shape = 'u32[144,128]{1,0:T(1,128)}', space=vmem, size = 0x12000, scoped, tag = 'internal scratch']
  %s0 = inlined_call_operand.vmem [shape: f32[16,8], index: 0, kind: input, shape index: {}]
  %s1 = inlined_call_operand.vmem [shape: f32[32,8], index: 1, kind: input, shape index: {}]
  %s2 = inlined_call_operand.vmem [shape: f32[1,32], index: 2, kind: input, shape index: {}]
  %s3 = inlined_call_operand.vmem [shape: f32[32,32], index: 3, kind: input, shape index: {}]
  %s4 = inlined_call_operand.vmem [shape: f32[1,32], index: 4, kind: input, shape index: {}]
  %s5 = inlined_call_operand.vmem [shape: f32[4,32], index: 5, kind: input, shape index: {}]
  %s6 = inlined_call_operand.vmem [shape: f32[1,4], index: 6, kind: input, shape index: {}]
  %s7 = inlined_call_operand.vmem [shape: f32[16,4], index: 7, kind: output, shape index: {}]
  %s8 = sld [smem:[#allocation0]]
  $region38: #{tpu_custom_call.1} parent=0
    _
  %s10 = ssub.s32 1, %s8
  %s11 = scalar_select 0, %s10, %s8
  // Predicated region
  $region2: #{tpu_custom_call.1} parent=0 // pred_check
    _
  $region3: #{tpu_custom_call.1} parent=0 // pred_check_branch
    %13 = sbr.rel (0) target = $region5
  $region4: #{tpu_custom_call.1} parent=0 // pred_region
    _
  $region5: #{tpu_custom_call.1} parent=0 // pred_fallthru
    _
  // Predicated region
  $region6: #{tpu_custom_call.1} parent=0 // pred_check
    _
  $region7: #{tpu_custom_call.1} parent=0 // pred_check_branch
    %15 = sbr.rel (0) target = $region9
  $region8: #{tpu_custom_call.1} parent=0 // pred_region
    _
  $region9: #{tpu_custom_call.1} parent=0 // pred_fallthru
    _
  // Predicated region
  $region10: #{tpu_custom_call.1} parent=0 // pred_check
    _
  $region11: #{tpu_custom_call.1} parent=0 // pred_check_branch
    %17 = sbr.rel (0) target = $region13
  $region12: #{tpu_custom_call.1} parent=0 // pred_region
    _
  $region13: #{tpu_custom_call.1} parent=0 // pred_fallthru
    _
  // Predicated region
  $region14: #{tpu_custom_call.1} parent=0 // pred_check
    _
  $region15: #{tpu_custom_call.1} parent=0 // pred_check_branch
    %19 = sbr.rel (0) target = $region17
  $region16: #{tpu_custom_call.1} parent=0 // pred_region
    _
  $region17: #{tpu_custom_call.1} parent=0 // pred_fallthru
    _
  // Predicated region
  $region18: #{tpu_custom_call.1} parent=0 // pred_check
    _
  $region19: #{tpu_custom_call.1} parent=0 // pred_check_branch
    %21 = sbr.rel (0) target = $region21
  $region20: #{tpu_custom_call.1} parent=0 // pred_region
    _
  $region21: #{tpu_custom_call.1} parent=0 // pred_fallthru
    _
  // Predicated region
  $region22: #{tpu_custom_call.1} parent=0 // pred_check
    _
  $region23: #{tpu_custom_call.1} parent=0 // pred_check_branch
    %23 = sbr.rel (0) target = $region25
  $region24: #{tpu_custom_call.1} parent=0 // pred_region
    _
  $region25: #{tpu_custom_call.1} parent=0 // pred_fallthru
    _
  // Predicated region
  $region26: #{tpu_custom_call.1} parent=0 // pred_check
    _
  $region27: #{tpu_custom_call.1} parent=0 // pred_check_branch
    %25 = sbr.rel (0) target = $region29
  $region28: #{tpu_custom_call.1} parent=0 // pred_region
    _
  $region29: #{tpu_custom_call.1} parent=0 // pred_fallthru
    _
  %v26 = vld [vmem:[%s0] sm:$0xff]
  %v27 = vld [vmem:[%s0 + $0x8] sm:$0xff]
  %v28 = vld [vmem:[%s1] sm:$0xff]
  %v29 = vld [vmem:[%s1 + $0x8] sm:$0xff]
  %v30 = vld [vmem:[%s1 + $0x10] sm:$0xff]
  %v31 = vld [vmem:[%s1 + $0x18] sm:$0xff]
  %v32 = vld [vmem:[%s2] sm:$0x1]
  %v34 = vlaneseq
  %v35 = vshrl.u32 %v34, 7
  %v36 = vsub.s32 0, %v35
  %v37 = vrot.slane %v32, %v36
  %vm39 = vcmask 64512
  %v41 = vsel %vm39, %v26, 0
  %v44 = vsel %vm39, %v27, 0
  %v47 = vsel %vm39, %v28, 0
  %v50 = vsel %vm39, %v29, 0
  %v53 = vsel %vm39, %v30, 0
  %v56 = vsel %vm39, %v31, 0
  %58 = vmatprep.subr.mxu0 0.0
  %59 = vmatpush1.xpose.msra.mxu0 0.0
  %60 = vmatprep.subr.mxu0 0.0
  %61 = vmatpush1.xpose.msra.mxu0 0.0
  %62 = vmatprep.subr.mxu0 0.0
  %63 = vmatpush1.xpose.msra.mxu0 0.0
  %64 = vmatprep.subr.mxu0 0.0
  %65 = vmatpush1.xpose.msra.mxu0 0.0
  %66 = vmatprep.subr.mxu0 0.0
  %67 = vmatpush1.xpose.msra.mxu0 0.0
  %68 = vmatprep.subr.mxu0 0.0
  %69 = vmatpush1.xpose.msra.mxu0 0.0
  %70 = vmatprep.subr.mxu0 0.0
  %71 = vmatpush1.xpose.msra.mxu0 0.0
  %72 = vmatprep.subr.mxu0 0.0
  %73 = vmatpush1.xpose.msra.mxu0 0.0
  %74 = vmatprep.subr.mxu0 0.0
  %75 = vmatpush1.xpose.msra.mxu0 0.0
  %76 = vmatprep.subr.mxu0 0.0
  %77 = vmatpush1.xpose.msra.mxu0 0.0
  %78 = vmatprep.subr.mxu0 0.0
  %79 = vmatpush1.xpose.msra.mxu0 0.0
  %80 = vmatprep.subr.mxu0 0.0
  %81 = vmatpush1.xpose.msra.mxu0 0.0
  %82 = vmatprep.subr.mxu0 0.0
  %83 = vmatpush1.xpose.msra.mxu0 %v56
  %84 = vmatprep.subr.mxu0 0.0
  %85 = vmatpush1.xpose.msra.mxu0 %v53
  %86 = vmatprep.subr.mxu0 0.0
  %87 = vmatpush1.xpose.msra.mxu0 %v50
  %88 = vmatprep.subr.mxu0 0.0
  %89 = vmatpush1.xpose.msra.mxu0 %v47
  %90 = vmatprep.subr.mxu0 0.0
  %91 = vmatpush2.xpose.msra.mxu0 0.0
  %92 = vmatprep.subr.mxu0 0.0
  %93 = vmatpush2.xpose.msra.mxu0 0.0
  %94 = vmatprep.subr.mxu0 0.0
  %95 = vmatpush2.xpose.msra.mxu0 0.0
  %96 = vmatprep.subr.mxu0 0.0
  %97 = vmatpush2.xpose.msra.mxu0 0.0
  %98 = vmatprep.subr.mxu0 0.0
  %99 = vmatpush2.xpose.msra.mxu0 0.0
  %100 = vmatprep.subr.mxu0 0.0
  %101 = vmatpush2.xpose.msra.mxu0 0.0
  %102 = vmatprep.subr.mxu0 0.0
  %103 = vmatpush2.xpose.msra.mxu0 0.0
  %104 = vmatprep.subr.mxu0 0.0
  %105 = vmatpush2.xpose.msra.mxu0 0.0
  %106 = vmatprep.subr.mxu0 0.0
  %107 = vmatpush2.xpose.msra.mxu0 0.0
  %108 = vmatprep.subr.mxu0 0.0
  %109 = vmatpush2.xpose.msra.mxu0 0.0
  %110 = vmatprep.subr.mxu0 0.0
  %111 = vmatpush2.xpose.msra.mxu0 0.0
  %112 = vmatprep.subr.mxu0 0.0
  %113 = vmatpush2.xpose.msra.mxu0 0.0
  %114 = vmatprep.subr.mxu0 0.0
  %115 = vmatpush2.xpose.msra.mxu0 0.0
  %116 = vmatprep.subr.mxu0 0.0
  %117 = vmatpush2.xpose.msra.mxu0 0.0
  %118 = vmatprep.subr.mxu0 0.0
  %119 = vmatpush2.xpose.msra.mxu0 0.0
  %120 = vmatprep.subr.mxu0 0.0
  %121 = vmatpush2.xpose.msra.mxu0 0.0
  %122 = vmatprep.mubr.f32.mxu0 0.0
  %123 = vmatmul.mubr.f32.gmra.mxu0 %v41
  %v124 = vpop.f32.mrf.mxu0
  %v125 = vadd.f32 %v37, %v124
  %v126 = vpop.f32.mrf.mxu0
  %127 = vmatprep.mubr.f32.mxu0 0.0
  %128 = vmatmul.mubr.f32.gmra.mxu0 %v44
  %v129 = vpop.f32.mrf.mxu0
  %v130 = vadd.f32 %v37, %v129
  %v131 = vpop.f32.mrf.mxu0
  %132 = vdwg.mxu0
  %v133 = vmax.f32 %v125, 0.0
  %v134 = vmax.f32 %v130, 0.0
  %v135 = vld [vmem:[%s3] sm:$0xff]
  %v136 = vld [vmem:[%s3 + $0x8] sm:$0xff]
  %v137 = vld [vmem:[%s3 + $0x10] sm:$0xff]
  %v138 = vld [vmem:[%s3 + $0x18] sm:$0xff]
  %v139 = vld [vmem:[%s4] sm:$0x1]
  %v141 = vlaneseq
  %v142 = vshrl.u32 %v141, 7
  %v143 = vsub.s32 0, %v142
  %v144 = vrot.slane %v139, %v143
  %vm146 = vcmask 261120
  %v148 = vsel %vm146, %v133, 0
  %v151 = vsel %vm146, %v134, 0
  %v154 = vsel %vm146, %v135, 0
  %v157 = vsel %vm146, %v136, 0
  %v160 = vsel %vm146, %v137, 0
  %v163 = vsel %vm146, %v138, 0
  %165 = vmatprep.subr.mxu0 0.0
  %166 = vmatpush1.xpose.msra.mxu0 0.0
  %167 = vmatprep.subr.mxu0 0.0
  %168 = vmatpush1.xpose.msra.mxu0 0.0
  %169 = vmatprep.subr.mxu0 0.0
  %170 = vmatpush1.xpose.msra.mxu0 0.0
  %171 = vmatprep.subr.mxu0 0.0
  %172 = vmatpush1.xpose.msra.mxu0 0.0
  %173 = vmatprep.subr.mxu0 0.0
  %174 = vmatpush1.xpose.msra.mxu0 0.0
  %175 = vmatprep.subr.mxu0 0.0
  %176 = vmatpush1.xpose.msra.mxu0 0.0
  %177 = vmatprep.subr.mxu0 0.0
  %178 = vmatpush1.xpose.msra.mxu0 0.0
  %179 = vmatprep.subr.mxu0 0.0
  %180 = vmatpush1.xpose.msra.mxu0 0.0
  %181 = vmatprep.subr.mxu0 0.0
  %182 = vmatpush1.xpose.msra.mxu0 0.0
  %183 = vmatprep.subr.mxu0 0.0
  %184 = vmatpush1.xpose.msra.mxu0 0.0
  %185 = vmatprep.subr.mxu0 0.0
  %186 = vmatpush1.xpose.msra.mxu0 0.0
  %187 = vmatprep.subr.mxu0 0.0
  %188 = vmatpush1.xpose.msra.mxu0 0.0
  %189 = vmatprep.subr.mxu0 0.0
  %190 = vmatpush1.xpose.msra.mxu0 %v163
  %191 = vmatprep.subr.mxu0 0.0
  %192 = vmatpush1.xpose.msra.mxu0 %v160
  %193 = vmatprep.subr.mxu0 0.0
  %194 = vmatpush1.xpose.msra.mxu0 %v157
  %195 = vmatprep.subr.mxu0 0.0
  %196 = vmatpush1.xpose.msra.mxu0 %v154
  %197 = vmatprep.subr.mxu0 0.0
  %198 = vmatpush2.xpose.msra.mxu0 0.0
  %199 = vmatprep.subr.mxu0 0.0
  %200 = vmatpush2.xpose.msra.mxu0 0.0
  %201 = vmatprep.subr.mxu0 0.0
  %202 = vmatpush2.xpose.msra.mxu0 0.0
  %203 = vmatprep.subr.mxu0 0.0
  %204 = vmatpush2.xpose.msra.mxu0 0.0
  %205 = vmatprep.subr.mxu0 0.0
  %206 = vmatpush2.xpose.msra.mxu0 0.0
  %207 = vmatprep.subr.mxu0 0.0
  %208 = vmatpush2.xpose.msra.mxu0 0.0
  %209 = vmatprep.subr.mxu0 0.0
  %210 = vmatpush2.xpose.msra.mxu0 0.0
  %211 = vmatprep.subr.mxu0 0.0
  %212 = vmatpush2.xpose.msra.mxu0 0.0
  %213 = vmatprep.subr.mxu0 0.0
  %214 = vmatpush2.xpose.msra.mxu0 0.0
  %215 = vmatprep.subr.mxu0 0.0
  %216 = vmatpush2.xpose.msra.mxu0 0.0
  %217 = vmatprep.subr.mxu0 0.0
  %218 = vmatpush2.xpose.msra.mxu0 0.0
  %219 = vmatprep.subr.mxu0 0.0
  %220 = vmatpush2.xpose.msra.mxu0 0.0
  %221 = vmatprep.subr.mxu0 0.0
  %222 = vmatpush2.xpose.msra.mxu0 0.0
  %223 = vmatprep.subr.mxu0 0.0
  %224 = vmatpush2.xpose.msra.mxu0 0.0
  %225 = vmatprep.subr.mxu0 0.0
  %226 = vmatpush2.xpose.msra.mxu0 0.0
  %227 = vmatprep.subr.mxu0 0.0
  %228 = vmatpush2.xpose.msra.mxu0 0.0
  %229 = vmatprep.mubr.f32.mxu0 0.0
  %230 = vmatmul.mubr.f32.gmra.mxu0 %v148
  %v231 = vpop.f32.mrf.mxu0
  %v232 = vadd.f32 %v144, %v231
  %v233 = vpop.f32.mrf.mxu0
  %234 = vmatprep.mubr.f32.mxu0 0.0
  %235 = vmatmul.mubr.f32.gmra.mxu0 %v151
  %v236 = vpop.f32.mrf.mxu0
  %v237 = vadd.f32 %v144, %v236
  %v238 = vpop.f32.mrf.mxu0
  %239 = vdwg.mxu0
  %v240 = vmax.f32 %v232, 0.0
  %v241 = vmax.f32 %v237, 0.0
  %v242 = vld [vmem:[%s5] sm:$0xf]
  %v243 = vld [vmem:[%s6] sm:$0x1]
  %v245 = vlaneseq
  %v246 = vshrl.u32 %v245, 7
  %v247 = vsub.s32 0, %v246
  %v248 = vrot.slane %v243, %v247
  %v251 = vsel %vm146, %v240, 0
  %v254 = vsel %vm146, %v241, 0
  %v257 = vsel %vm146, %v242, 0
  %259 = vmatprep.subr.mxu0 0.0
  %260 = vmatpush1.xpose.msra.mxu0 0.0
  %261 = vmatprep.subr.mxu0 0.0
  %262 = vmatpush1.xpose.msra.mxu0 0.0
  %263 = vmatprep.subr.mxu0 0.0
  %264 = vmatpush1.xpose.msra.mxu0 0.0
  %265 = vmatprep.subr.mxu0 0.0
  %266 = vmatpush1.xpose.msra.mxu0 0.0
  %267 = vmatprep.subr.mxu0 0.0
  %268 = vmatpush1.xpose.msra.mxu0 0.0
  %269 = vmatprep.subr.mxu0 0.0
  %270 = vmatpush1.xpose.msra.mxu0 0.0
  %271 = vmatprep.subr.mxu0 0.0
  %272 = vmatpush1.xpose.msra.mxu0 0.0
  %273 = vmatprep.subr.mxu0 0.0
  %274 = vmatpush1.xpose.msra.mxu0 0.0
  %275 = vmatprep.subr.mxu0 0.0
  %276 = vmatpush1.xpose.msra.mxu0 0.0
  %277 = vmatprep.subr.mxu0 0.0
  %278 = vmatpush1.xpose.msra.mxu0 0.0
  %279 = vmatprep.subr.mxu0 0.0
  %280 = vmatpush1.xpose.msra.mxu0 0.0
  %281 = vmatprep.subr.mxu0 0.0
  %282 = vmatpush1.xpose.msra.mxu0 0.0
  %283 = vmatprep.subr.mxu0 0.0
  %284 = vmatpush1.xpose.msra.mxu0 0.0
  %285 = vmatprep.subr.mxu0 0.0
  %286 = vmatpush1.xpose.msra.mxu0 0.0
  %287 = vmatprep.subr.mxu0 0.0
  %288 = vmatpush1.xpose.msra.mxu0 0.0
  %289 = vmatprep.subr.mxu0 0.0
  %290 = vmatpush1.xpose.msra.mxu0 %v257
  %291 = vmatprep.subr.mxu0 0.0
  %292 = vmatpush2.xpose.msra.mxu0 0.0
  %293 = vmatprep.subr.mxu0 0.0
  %294 = vmatpush2.xpose.msra.mxu0 0.0
  %295 = vmatprep.subr.mxu0 0.0
  %296 = vmatpush2.xpose.msra.mxu0 0.0
  %297 = vmatprep.subr.mxu0 0.0
  %298 = vmatpush2.xpose.msra.mxu0 0.0
  %299 = vmatprep.subr.mxu0 0.0
  %300 = vmatpush2.xpose.msra.mxu0 0.0
  %301 = vmatprep.subr.mxu0 0.0
  %302 = vmatpush2.xpose.msra.mxu0 0.0
  %303 = vmatprep.subr.mxu0 0.0
  %304 = vmatpush2.xpose.msra.mxu0 0.0
  %305 = vmatprep.subr.mxu0 0.0
  %306 = vmatpush2.xpose.msra.mxu0 0.0
  %307 = vmatprep.subr.mxu0 0.0
  %308 = vmatpush2.xpose.msra.mxu0 0.0
  %309 = vmatprep.subr.mxu0 0.0
  %310 = vmatpush2.xpose.msra.mxu0 0.0
  %311 = vmatprep.subr.mxu0 0.0
  %312 = vmatpush2.xpose.msra.mxu0 0.0
  %313 = vmatprep.subr.mxu0 0.0
  %314 = vmatpush2.xpose.msra.mxu0 0.0
  %315 = vmatprep.subr.mxu0 0.0
  %316 = vmatpush2.xpose.msra.mxu0 0.0
  %317 = vmatprep.subr.mxu0 0.0
  %318 = vmatpush2.xpose.msra.mxu0 0.0
  %319 = vmatprep.subr.mxu0 0.0
  %320 = vmatpush2.xpose.msra.mxu0 0.0
  %321 = vmatprep.subr.mxu0 0.0
  %322 = vmatpush2.xpose.msra.mxu0 0.0
  %323 = vmatprep.mubr.f32.mxu0 0.0
  %324 = vmatmul.mubr.f32.gmra.mxu0 %v251
  %v325 = vpop.f32.mrf.mxu0
  %v326 = vadd.f32 %v248, %v325
  %v327 = vpop.f32.mrf.mxu0
  %328 = vmatprep.mubr.f32.mxu0 0.0
  %329 = vmatmul.mubr.f32.gmra.mxu0 %v254
  %v330 = vpop.f32.mrf.mxu0
  %v331 = vadd.f32 %v248, %v330
  %v332 = vpop.f32.mrf.mxu0
  %333 = vdwg.mxu0
  %vm334 = vcmask 31744
  %335 = vst.msk [vmem:[%s7] sm:$0xff] %vm334, %v326
  %336 = vst.msk [vmem:[%s7 + $0x8] sm:$0xff] %vm334, %v331
  // Predicated region
  $region30: #{tpu_custom_call.1} parent=0 // pred_check
    _
  $region31: #{tpu_custom_call.1} parent=0 // pred_check_branch
    %338 = sbr.rel (0) target = $region33
  $region32: #{tpu_custom_call.1} parent=0 // pred_region
    _
  $region33: #{tpu_custom_call.1} parent=0 // pred_fallthru
    _
  // Predicated region
  $region34: #{tpu_custom_call.1} parent=0 // pred_check
    _
  $region35: #{tpu_custom_call.1} parent=0 // pred_check_branch
    %340 = sbr.rel (0) target = $region37
  $region36: #{tpu_custom_call.1} parent=0 // pred_region
    _
  $region37: #{tpu_custom_call.1} parent=0 // pred_fallthru
    _

</llo_original>
